<compile_context>
chip_gen: v5e
topology: v5e:2x2
jax: 0.10.0
libtpu: 0.0.40
codegen_flags: <defaults>
</compile_context>

<pallas_src>
import functools

import jax
import jax.numpy as jnp
from jax.experimental import pallas as pl
from jax.experimental.pallas import tpu as pltpu


LANE = 128        # lane width of a vreg / MXU tile
BIAS_ROWS = 16    # bf16 sublane tile height -> keeps slab blocks tile-aligned
SMALL_BATCH = 64  # below this, skip the kernel and use plain jnp


def _round_up(x, m):
    return ((x + m - 1) // m) * m


def _make_packed_mlp_kernel(layer_meta, n_out=2):
    """Build the fused MLP kernel.

    layer_meta: tuple of (w_row_off, b_row_off, k_dim, out_pad) per layer;
    the last entry is the output layer (out_pad lanes, n_out meaningful).
    """
    n_layers = len(layer_meta)

    def kernel(x_ref, slab_ref, out_ref):
        h = x_ref[...]  # (tile_b, K0) bf16 -- un-padded feature lanes
        for li, (w_off, b_off, k, out_p) in enumerate(layer_meta):
            w = slab_ref[w_off:w_off + k, 0:out_p]    # bf16 (k, out_p)
            b = slab_ref[b_off:b_off + 1, 0:out_p]    # bf16 (1, out_p)
            z = jnp.dot(h, w, preferred_element_type=jnp.float32)
            z = z + b.astype(jnp.float32)
            if li < n_layers - 1:
                h = jnp.maximum(z, 0.0).astype(jnp.bfloat16)   # ReLU, back to bf16
            else:
                # Beta concentrations |p| + 0.01, transposed so the batch axis
                # is the lane axis -> lane-dense (2, tile_b) store, 64x less
                # HBM writeback than a (tile_b, 128) f32 slab.
                zt = jnp.transpose(z)                 # (out_p, tile_b), XLU
                out_ref[...] = jnp.abs(zt[0:n_out, :]) + jnp.float32(0.01)

    return kernel


class NeuralNetPallas:
    """JAX/Pallas re-implementation of the PyTorch NeuralNet module.

    Returns the (alpha, beta) concentration parameters of the Beta
    distribution instead of a torch.distributions.Beta object.
    """

    def __init__(self, n_features, hidden_layers=None, key=None, tile_b=512):
        hidden_layers = [] if hidden_layers is None else list(hidden_layers)
        if key is None:
            key = jax.random.PRNGKey(0)
        self.n_features = n_features
        self.hidden_layers = hidden_layers
        self.tile_b = tile_b

        # Deterministic parameter init (uniform like torch.nn.Linear's
        # kaiming-uniform fan-in bound: U(-1/sqrt(fan_in), 1/sqrt(fan_in))).
        sizes = [n_features] + hidden_layers + [2]
        self.layer_params = []  # logical f32 (w: (in, out), b: (out,))
        for i in range(len(sizes) - 1):
            fan_in, fan_out = sizes[i], sizes[i + 1]
            key, kw, kb = jax.random.split(key, 3)
            bound = 1.0 / float(fan_in) ** 0.5
            w = jax.random.uniform(kw, (fan_in, fan_out), jnp.float32,
                                   minval=-bound, maxval=bound)
            b = jax.random.uniform(kb, (fan_out,), jnp.float32,
                                   minval=-bound, maxval=bound)
            self.layer_params.append((w, b))

        # ---- Pack weights + biases into one pre-padded bf16 slab -------------
        # Per layer i (lane-padded to slab_cols, zero-filled):
        #   rows [off, off+k_rows)               : W_i
        #   rows [off+k_rows, off+k_rows+16)     : row 0 = bias_i, rest zero
        # Layer 0 keeps its true K (= n_features) so the kernel dots directly
        # against the un-padded input; deeper layers use 128-lane-padded K
        # because the previous layer's activations are lane-padded with zeros.
        lane_pads = [_round_up(s, LANE) for s in sizes]
        slab_cols = max(lane_pads[1:])
        self.out_pad = lane_pads[-1]
        blocks, layer_meta = [], []
        off = 0
        for i, (w, b) in enumerate(self.layer_params):
            k_true = w.shape[0]
            k_rows = _round_up(k_true, BIAS_ROWS) if i == 0 else lane_pads[i]
            k_dot = k_true if i == 0 else lane_pads[i]
            out_p = lane_pads[i + 1]
            w_blk = jnp.zeros((k_rows, slab_cols), jnp.float32)
            w_blk = w_blk.at[:w.shape[0], :w.shape[1]].set(w)
            b_blk = jnp.zeros((BIAS_ROWS, slab_cols), jnp.float32)
            b_blk = b_blk.at[0, :b.shape[0]].set(b)
            blocks += [w_blk, b_blk]
            layer_meta.append((off, off + k_rows, k_dot, out_p))
            off += k_rows + BIAS_ROWS
        self.slab = jnp.concatenate(blocks, axis=0).astype(jnp.bfloat16)
        self._layer_meta = tuple(layer_meta)
        self._kernel = _make_packed_mlp_kernel(self._layer_meta, n_out=2)

    # ------------------------------------------------------------------ tiling
    def _choose_tile(self, B):
        # Largest lane-aligned tile (amortizes ~0.35us/step grid overhead),
        # capped at 2048 rows (keeps v5e's 16 MiB scoped VMEM comfortable) and
        # at the padded batch size.
        cap = max(LANE, (min(self.tile_b, 2048) // LANE) * LANE)
        tile = min(cap, _round_up(B, LANE))
        # Keep >= 2 grid steps when the batch allows it so both v7x
        # TensorCores get work under dimension_semantics=("parallel",).
        if B > LANE and _round_up(B, tile) // tile < 2:
            tile = min(tile, _round_up((B + 1) // 2, LANE))
        return tile

    # ---------------------------------------------------------------- kernels
    @functools.partial(jax.jit, static_argnums=0)
    def _forward_batched(self, xb):
        """xb: (B, n_features) -> (alpha, beta) each of shape (B,)."""
        B = xb.shape[0]
        tile_b = self._choose_tile(B)
        b_pad = _round_up(B, tile_b)

        xb = xb.astype(jnp.bfloat16)
        if b_pad != B:
            xb = jnp.pad(xb, ((0, b_pad - B), (0, 0)))   # batch-row pad only

        out = pl.pallas_call(
            self._kernel,
            out_shape=jax.ShapeDtypeStruct((2, b_pad), jnp.float32),
            grid=(b_pad // tile_b,),
            in_specs=[
                # raw (tile_b, n_features) activation tile: last dim equals the
                # full array dim, so no 128-lane HBM padding is needed
                pl.BlockSpec((tile_b, self.n_features), lambda i: (i, 0)),
                # packed weight slab: constant block index -> resident in VMEM
                pl.BlockSpec(self.slab.shape, lambda i: (0, 0)),
            ],
            # lane-dense (2, tile_b) block of the (2, b_pad) transposed output
            out_specs=pl.BlockSpec((2, tile_b), lambda i: (0, i)),
            compiler_params=pltpu.CompilerParams(
                dimension_semantics=("parallel",)),
        )(xb, self.slab)

        return out[0, :B], out[1, :B]

    @functools.partial(jax.jit, static_argnums=0)
    def _forward_small(self, xb):
        """Tiny-batch bypass: same bf16/f32 numerics, no kernel launch."""
        h = xb.astype(jnp.bfloat16)
        n = len(self.layer_params)
        params = None
        for i, (w, b) in enumerate(self.layer_params):
            z = jnp.dot(h, w.astype(jnp.bfloat16),
                        preferred_element_type=jnp.float32)
            z = z + b.astype(jnp.bfloat16).astype(jnp.float32)
            if i < n - 1:
                h = jnp.maximum(z, 0.0).astype(jnp.bfloat16)
            else:
                params = z
        return jnp.abs(params[:, 0]) + 0.01, jnp.abs(params[:, 1]) + 0.01

    def __call__(self, x):
        # TODO(synk): torch.distributions.Beta has no Pallas equivalent; we
        # return its concentration parameters (alpha, beta) instead.
        if x.ndim == 1:
            a, b = self._forward_small(x.reshape(1, -1))
            return a[0], b[0]
        if x.shape[0] < SMALL_BATCH:
            return self._forward_small(x)
        return self._forward_batched(x)


def _reference_forward(net: NeuralNetPallas, xb):
    """Pure-JAX reference (same bf16 weights, f32 accumulation)."""
    h = xb.reshape(-1, net.n_features).astype(jnp.bfloat16)
    n = len(net.layer_params)
    p = None
    for i, (w, b) in enumerate(net.layer_params):
        z = jnp.dot(h, w.astype(jnp.bfloat16),
                    preferred_element_type=jnp.float32)
        z = z + b.astype(jnp.bfloat16).astype(jnp.float32)
        if i < n - 1:
            h = jnp.maximum(z, 0.0).astype(jnp.bfloat16)
        else:
            p = z
    return jnp.abs(p[:, 0]) + 0.01, jnp.abs(p[:, 1]) + 0.01


if __name__ == "__main__":
    n_features = 32
    hidden_layers = [32, 16]
    B = 256  # -> two 128-row grid tiles (keeps >=2 steps for v7x megacore)

    key = jax.random.PRNGKey(0)
    key, xkey, pkey = jax.random.split(key, 3)
    x_batch = jax.random.normal(xkey, (B, n_features), jnp.float32)

    net = NeuralNetPallas(n_features, hidden_layers, key=pkey)

    # Batched path (Pallas kernel).
    alpha, beta = net(x_batch)
    alpha = jax.block_until_ready(alpha)
    beta = jax.block_until_ready(beta)

    ref_alpha, ref_beta = _reference_forward(net, x_batch)
    assert alpha.shape == (B,) and beta.shape == (B,)
    assert jnp.allclose(alpha, ref_alpha, rtol=5e-3, atol=5e-3), (
        float(jnp.max(jnp.abs(alpha - ref_alpha))))
    assert jnp.allclose(beta, ref_beta, rtol=5e-3, atol=5e-3), (
        float(jnp.max(jnp.abs(beta - ref_beta))))
    assert bool(jnp.all(alpha > 0.0)) and bool(jnp.all(beta > 0.0))

    # Kernel path with a batch that is not a tile multiple (exercises padding).
    alpha2, beta2 = net(x_batch[:200])
    alpha2 = jax.block_until_ready(alpha2)
    beta2 = jax.block_until_ready(beta2)
    assert alpha2.shape == (200,)
    assert jnp.allclose(alpha2, ref_alpha[:200], rtol=5e-3, atol=5e-3)
    assert jnp.allclose(beta2, ref_beta[:200], rtol=5e-3, atol=5e-3)

    # Single-example path (matches the PyTorch module's 1-D usage) -> jnp bypass.
    a1, b1 = net(x_batch[0])
    a1 = jax.block_until_ready(a1)
    b1 = jax.block_until_ready(b1)
    assert jnp.allclose(a1, ref_alpha[0], rtol=5e-3, atol=5e-3)
    assert jnp.allclose(b1, ref_beta[0], rtol=5e-3, atol=5e-3)

    print("KERNEL_OK")
</pallas_src>

<mosaic_0001>
module attributes {stable_mosaic.version = 11 : i64} {
  func.func @kernel(%arg0: i32, %arg1: memref<128x32xbf16, #tpu.memory_space<vmem>>, %arg2: memref<336x128xbf16, #tpu.memory_space<vmem>>, %arg3: memref<2x128xf32, #tpu.memory_space<vmem>>) attributes {dimension_semantics = [#tpu.dimension_semantics<parallel>], iteration_bounds = array<i64: 2>, scalar_prefetch = 0 : i64, scratch_operands = 0 : i64, tpu.core_type = #tpu.core_type<tc>, window_params = [{transform_indices = @transform_0, window_bounds = array<i64: 128, 32>}, {pipeline_mode = #tpu.pipeline_mode<synchronous>, transform_indices = @transform_1, window_bounds = array<i64: 336, 128>}, {transform_indices = @transform_2, window_bounds = array<i64: 2, 128>}]} {
    %c0 = arith.constant 0 : index
    %c0_0 = arith.constant 0 : index
    %0 = vector.load %arg1[%c0, %c0_0] : memref<128x32xbf16, #tpu.memory_space<vmem>>, vector<128x32xbf16>
    %c0_1 = arith.constant 0 : index
    %c0_2 = arith.constant 0 : index
    %1 = vector.load %arg2[%c0_1, %c0_2] : memref<336x128xbf16, #tpu.memory_space<vmem>>, vector<32x128xbf16>
    %c32 = arith.constant 32 : index
    %c0_3 = arith.constant 0 : index
    %2 = vector.load %arg2[%c32, %c0_3] : memref<336x128xbf16, #tpu.memory_space<vmem>>, vector<1x128xbf16>
    %cst = arith.constant dense<0.000000e+00> : vector<128x128xf32>
    %3 = tpu.matmul %0, %1, %cst {dimension_numbers = #tpu.dot_dimension_numbers<[1], [0], [0], [1], [0, 0, 1, 1], [], []>} : vector<128x32xbf16>, vector<32x128xbf16>, vector<128x128xf32> -> vector<128x128xf32>
    %4 = arith.extf %2 : vector<1x128xbf16> to vector<1x128xf32>
    %5 = vector.broadcast %4 : vector<1x128xf32> to vector<128x128xf32>
    %6 = arith.addf %3, %5 : vector<128x128xf32>
    %cst_4 = arith.constant 0.000000e+00 : f32
    %7 = vector.broadcast %cst_4 : f32 to vector<128x128xf32>
    %8 = arith.maximumf %6, %7 : vector<128x128xf32>
    %9 = arith.truncf %8 : vector<128x128xf32> to vector<128x128xbf16>
    %c48 = arith.constant 48 : index
    %c0_5 = arith.constant 0 : index
    %10 = vector.load %arg2[%c48, %c0_5] : memref<336x128xbf16, #tpu.memory_space<vmem>>, vector<128x128xbf16>
    %c176 = arith.constant 176 : index
    %c0_6 = arith.constant 0 : index
    %11 = vector.load %arg2[%c176, %c0_6] : memref<336x128xbf16, #tpu.memory_space<vmem>>, vector<1x128xbf16>
    %cst_7 = arith.constant dense<0.000000e+00> : vector<128x128xf32>
    %12 = tpu.matmul %9, %10, %cst_7 {dimension_numbers = #tpu.dot_dimension_numbers<[1], [0], [0], [1], [0, 0, 1, 1], [], []>} : vector<128x128xbf16>, vector<128x128xbf16>, vector<128x128xf32> -> vector<128x128xf32>
    %13 = arith.extf %11 : vector<1x128xbf16> to vector<1x128xf32>
    %14 = vector.broadcast %13 : vector<1x128xf32> to vector<128x128xf32>
    %15 = arith.addf %12, %14 : vector<128x128xf32>
    %cst_8 = arith.constant 0.000000e+00 : f32
    %16 = vector.broadcast %cst_8 : f32 to vector<128x128xf32>
    %17 = arith.maximumf %15, %16 : vector<128x128xf32>
    %18 = arith.truncf %17 : vector<128x128xf32> to vector<128x128xbf16>
    %c192 = arith.constant 192 : index
    %c0_9 = arith.constant 0 : index
    %19 = vector.load %arg2[%c192, %c0_9] : memref<336x128xbf16, #tpu.memory_space<vmem>>, vector<128x128xbf16>
    %c320 = arith.constant 320 : index
    %c0_10 = arith.constant 0 : index
    %20 = vector.load %arg2[%c320, %c0_10] : memref<336x128xbf16, #tpu.memory_space<vmem>>, vector<1x128xbf16>
    %cst_11 = arith.constant dense<0.000000e+00> : vector<128x128xf32>
    %21 = tpu.matmul %18, %19, %cst_11 {dimension_numbers = #tpu.dot_dimension_numbers<[1], [0], [0], [1], [0, 0, 1, 1], [], []>} : vector<128x128xbf16>, vector<128x128xbf16>, vector<128x128xf32> -> vector<128x128xf32>
    %22 = arith.extf %20 : vector<1x128xbf16> to vector<1x128xf32>
    %23 = vector.broadcast %22 : vector<1x128xf32> to vector<128x128xf32>
    %24 = arith.addf %21, %23 : vector<128x128xf32>
    %25 = tpu.transpose %24, [1, 0] : vector<128x128xf32> -> vector<128x128xf32>
    %26 = vector.extract_strided_slice %25 {offsets = [0, 0], sizes = [2, 128], strides = [1, 1]} : vector<128x128xf32> to vector<2x128xf32>
    %27 = math.absf %26 : vector<2x128xf32>
    %cst_12 = arith.constant 0.00999999977 : f32
    %28 = vector.broadcast %cst_12 : f32 to vector<2x128xf32>
    %29 = arith.addf %27, %28 : vector<2x128xf32>
    %c0_13 = arith.constant 0 : index
    %c0_14 = arith.constant 0 : index
    %30 = vector.load %arg3[%c0_13, %c0_14] : memref<2x128xf32, #tpu.memory_space<vmem>>, vector<2x128xf32>
    tpu.vector_store %arg3[%c0_13, %c0_14], %29 {strides = array<i32>} : memref<2x128xf32, #tpu.memory_space<vmem>>, vector<2x128xf32>,
    return
  }
  func.func @transform_0(%arg0: i32) -> (i32, i32) {
    %c0_i32 = arith.constant 0 : i32
    %c0_i32_0 = arith.constant 0 : i32
    return %arg0, %c0_i32 : i32, i32
  }
  func.func @transform_1(%arg0: i32) -> (i32, i32) {
    %c0_i32 = arith.constant 0 : i32
    %c0_i32_0 = arith.constant 0 : i32
    %c0_i32_1 = arith.constant 0 : i32
    return %c0_i32, %c0_i32_0 : i32, i32
  }
  func.func @transform_2(%arg0: i32) -> (i32, i32) {
    %c0_i32 = arith.constant 0 : i32
    %c0_i32_0 = arith.constant 0 : i32
    return %c0_i32, %arg0 : i32, i32
  }
}

</mosaic_0001>

<llo_original>
// kernel: _forward_batched.1
$region0: #{_forward_batched.1}
  #allocation0 [shape = 'u32[]', space=smem, size = 0x4, offset = 0x4, fixed_abs, tag = 'smem constant byte address 0x4 - core index']
  #allocation1 [shape = 'u32[72,128]{1,0:T(1,128)}', space=vmem, size = 0x9000, scoped, tag = 'internal scratch']
  %s0 = inlined_call_operand.vmem [shape: bf16[256,32], index: 0, kind: input, shape index: {}]
  %s1 = inlined_call_operand.vmem [shape: bf16[336,128], index: 1, kind: input, shape index: {}]
  %s2 = inlined_call_operand.vmem [shape: f32[2,256], index: 2, kind: output, shape index: {}]
  %s3 = sld [smem:[#allocation0]]
  $region41: #{_forward_batched.1} parent=0
    _
  %s5 = ssub.s32 1, %s3
  %s6 = scalar_select 0, %s5, %s3
  loop: start=0, step=1, limit=4
  $region2: #{_forward_batched.1} parent=0 // loop_pre_header
    _
  $region3: #{_forward_batched.1} parent=0 // loop_header
    %s8 = sphi 0, %s12
    %p9 = scmp.ge.s32.totalorder %s8, 4
    %s18 = sphi 0, %s20
    %s21 = sphi 0, %s18
    %s22 = sphi 0, %s21
    %s38 = sphi 0, %s22
    %s42 = sphi 0, %s42
    %s44 = sphi 0, %s42
    %s45 = sphi 0, %s44
    %s59 = sphi 0, %s45
    %s65 = sphi 0, %s67
    %s68 = sphi 0, %s65
    %s69 = sphi 0, %s68
    %s85 = sphi 0, %s69
  $region4: #{_forward_batched.1} parent=0 // loop_header_branch
    %11 = sbr.rel (%p9) target = $region8
  $region5: #{_forward_batched.1} parent=0 // loop_body
    %s13 = ssub.s32 %s8, 1
    %s14 = ssub.s32 %s8, 2
    %s15 = sadd.s32 %s8, 1
    %s16 = ssub.s32 %s8, %s15
    %p17 = scmp.eq.s32.totalorder %s16, 0
    %s19 = sadd.s32 %s18, 1
    %s20 = scalar_select %p17, %s18, %s19
    %p23 = pneg %p17
    %p24 = scmp.eq.s32.totalorder %s8, 1
    %p25 = por %p23, %p24
    %p26 = scmp.ne.s32.totalorder %s18, %s21
    %p27 = scmp.eq.s32.totalorder %s8, 0
    %p28 = por %p26, %p27
    %p29 = scmp.ne.s32.totalorder %s18, %s21
    %p30 = scmp.eq.s32.totalorder %s13, 1
    %p31 = por %p29, %p30
    %p32 = scmp.ne.s32.totalorder %s21, %s22
    %p33 = scmp.eq.s32.totalorder %s13, 0
    %p34 = por %p32, %p33
    %p35 = scmp.ne.s32.totalorder %s21, %s22
    %p36 = scmp.eq.s32.totalorder %s14, 1
    %p37 = por %p35, %p36
    %p39 = scmp.ne.s32.totalorder %s22, %s38
    %p40 = scmp.eq.s32.totalorder %s14, 0
    %p41 = por %p39, %p40
    %s43 = sadd.s32 %s42, 1
    %p46 = scmp.eq.s32.totalorder %s8, 1
    %p47 = scmp.ne.s32.totalorder %s42, %s44
    %p48 = scmp.eq.s32.totalorder %s8, 0
    %p49 = por %p47, %p48
    %p50 = scmp.ne.s32.totalorder %s42, %s44
    %p51 = scmp.eq.s32.totalorder %s13, 1
    %p52 = por %p50, %p51
    %p53 = scmp.ne.s32.totalorder %s44, %s45
    %p54 = scmp.eq.s32.totalorder %s13, 0
    %p55 = por %p53, %p54
    %p56 = scmp.ne.s32.totalorder %s44, %s45
    %p57 = scmp.eq.s32.totalorder %s14, 1
    %p58 = por %p56, %p57
    %p60 = scmp.ne.s32.totalorder %s45, %s59
    %p61 = scmp.eq.s32.totalorder %s14, 0
    %p62 = por %p60, %p61
    %s63 = ssub.s32 %s8, %s15
    %p64 = scmp.eq.s32.totalorder %s63, 0
    %s66 = sadd.s32 %s65, 1
    %s67 = scalar_select %p64, %s65, %s66
    %p70 = pneg %p64
    %p71 = scmp.eq.s32.totalorder %s8, 1
    %p72 = por %p70, %p71
    %p73 = scmp.ne.s32.totalorder %s65, %s68
    %p74 = scmp.eq.s32.totalorder %s8, 0
    %p75 = por %p73, %p74
    %p76 = scmp.ne.s32.totalorder %s65, %s68
    %p77 = scmp.eq.s32.totalorder %s13, 1
    %p78 = por %p76, %p77
    %p79 = scmp.ne.s32.totalorder %s68, %s69
    %p80 = scmp.eq.s32.totalorder %s13, 0
    %p81 = por %p79, %p80
    %p82 = scmp.ne.s32.totalorder %s68, %s69
    %p83 = scmp.eq.s32.totalorder %s14, 1
    %p84 = por %p82, %p83
    %p86 = scmp.ne.s32.totalorder %s69, %s85
    %p87 = scmp.eq.s32.totalorder %s14, 0
    %p88 = por %p86, %p87
    %p89 = scmp.le.s32.totalorder 1, %s8
    %p90 = scmp.lt.s32.totalorder %s8, 3
    %p91 = pnand %p89, %p90
    %p92 = pneg %p91
    // Predicated region
    $region9: #{_forward_batched.1} parent=5 // pred_check
      _
    $region10: #{_forward_batched.1} parent=5 // pred_check_branch
      %94 = sbr.rel (%p91) target = $region12
    $region11: #{_forward_batched.1} parent=5 // pred_region
      %s95 = ssub.s32 %s8, 1
      // Predicated region
      $region13: #{_forward_batched.1} parent=11 // pred_check
        %p96 = pneg %p55
      $region14: #{_forward_batched.1} parent=11 // pred_check_branch
        %98 = sbr.rel (%p96) target = $region16
      $region15: #{_forward_batched.1} parent=11 // pred_region
        _
      $region16: #{_forward_batched.1} parent=11 // pred_fallthru
        _
    $region12: #{_forward_batched.1} parent=5 // pred_fallthru
      _
    %p99 = scmp.lt.s32.totalorder %s8, 2
    // Predicated region
    $region17: #{_forward_batched.1} parent=5 // pred_check
      %p100 = pneg %p99
    $region18: #{_forward_batched.1} parent=5 // pred_check_branch
      %102 = sbr.rel (%p100) target = $region20
    $region19: #{_forward_batched.1} parent=5 // pred_region
      // Predicated region
      $region21: #{_forward_batched.1} parent=19 // pred_check
        %p103 = pneg %p28
      $region22: #{_forward_batched.1} parent=19 // pred_check_branch
        %105 = sbr.rel (%p103) target = $region24
      $region23: #{_forward_batched.1} parent=19 // pred_region
        %s106 = smul.u32 16, %s8
        %p107 = scmp.lt.s32.totalorder %s106, 31
        %s108 = scalar_select %p107, %s106, 31
        %s109 = smul.addr %s108, 4
        %s110 = scalar_lea.vmem %s0, %s109
        %s111 = smul.u32 16, %s8
      $region24: #{_forward_batched.1} parent=19 // pred_fallthru
        _
    $region20: #{_forward_batched.1} parent=5 // pred_fallthru
      _
    %p112 = scmp.le.s32.totalorder 1, %s8
    %p113 = scmp.lt.s32.totalorder %s8, 3
    %p114 = pnand %p112, %p113
    %p115 = pneg %p114
    // Predicated region
    $region25: #{_forward_batched.1} parent=5 // pred_check
      _
    $region26: #{_forward_batched.1} parent=5 // pred_check_branch
      %117 = sbr.rel (%p114) target = $region28
    $region27: #{_forward_batched.1} parent=5 // pred_region
      %s118 = ssub.s32 %s8, 1
      %s119 = smul.u32 16, %s13
      %p120 = scmp.lt.s32.totalorder %s119, 31
      %s121 = scalar_select %p120, %s119, 31
      %s122 = smul.addr %s121, 4
      %s123 = scalar_lea.vmem %s0, %s122
      %p124 = pneg %p34
      %p125 = pneg %p31
      %p126 = pneg %p55
      %p127 = pneg %p52
      %p128 = pneg %p81
      %p129 = pneg %p78
      %p130 = scmp.lt.s32.totalorder %s13, 1
      %s131 = scalar_select %p130, %s13, 1
      %s132 = smul.addr %s131, 2
      %s133 = scalar_lea.vmem %s2, %s132
      %s134 = smul.u32 16, %s13
      %p135 = scmp.lt.s32.totalorder %s134, 31
      %s136 = scalar_select %p135, %s134, 31
      %s137 = smul.addr %s136, 4
      %s138 = scalar_lea.vmem %s0, %s137
      %s139 = smul.u32 16, %s13
      %p140 = scmp.lt.s32.totalorder %s13, 1
      %s141 = scalar_select %p140, %s13, 1
      %s142 = smul.addr %s141, 2
      %s143 = scalar_lea.vmem %s2, %s142
      %v145 = vld [vmem:[%s138] sm:$0xf]
      %v146 = vld [vmem:[%s138 + $0x4] sm:$0xf]
      %v147 = vld [vmem:[%s138 + $0x8] sm:$0xf]
      %v148 = vld [vmem:[%s138 + $0xc] sm:$0xf]
      %v149 = vld [vmem:[%s138 + $0x10] sm:$0xf]
      %v150 = vld [vmem:[%s138 + $0x14] sm:$0xf]
      %v151 = vld [vmem:[%s138 + $0x18] sm:$0xf]
      %v152 = vld [vmem:[%s138 + $0x1c] sm:$0xf]
      %v153 = vld [vmem:[%s138 + $0x20] sm:$0xf]
      %v154 = vld [vmem:[%s138 + $0x24] sm:$0xf]
      %v155 = vld [vmem:[%s138 + $0x28] sm:$0xf]
      %v156 = vld [vmem:[%s138 + $0x2c] sm:$0xf]
      %v157 = vld [vmem:[%s138 + $0x30] sm:$0xf]
      %v158 = vld [vmem:[%s138 + $0x34] sm:$0xf]
      %v159 = vld [vmem:[%s138 + $0x38] sm:$0xf]
      %v160 = vld [vmem:[%s138 + $0x3c] sm:$0xf]
      %v161 = vld [vmem:[%s1] sm:$0xf]
      %v162 = vld [vmem:[%s1 + $0x4] sm:$0xf]
      %v163 = vld [vmem:[%s1 + $0x8] sm:$0xf]
      %v164 = vld [vmem:[%s1 + $0xc] sm:$0xf]
      %v165 = vld [vmem:[%s1 + $0x10] sm:$0x1]
      %v166 = vunpack.c.l.bf16 %v165
      %v167 = vperm.slane %v166, 0
      %v184 = vunpack.c.l.b16 %v145
      %v185 = vunpack.c.l.b16 %v146
      %v186 = vunpack.c.l.b16 %v147
      %v187 = vunpack.c.l.b16 %v148
      %v188 = vunpack.c.l.b16 %v149
      %v189 = vunpack.c.l.b16 %v150
      %v190 = vunpack.c.l.b16 %v151
      %v191 = vunpack.c.l.b16 %v152
      %v192 = vunpack.c.l.b16 %v153
      %v193 = vunpack.c.l.b16 %v154
      %v194 = vunpack.c.l.b16 %v155
      %v195 = vunpack.c.l.b16 %v156
      %v196 = vunpack.c.l.b16 %v157
      %v197 = vunpack.c.l.b16 %v158
      %v198 = vunpack.c.l.b16 %v159
      %v199 = vunpack.c.l.b16 %v160
      %v200 = vpack.c.b16 %v185, %v184
      %v201 = vpack.c.b16 %v187, %v186
      %v202 = vpack.c.b16 %v189, %v188
      %v203 = vpack.c.b16 %v191, %v190
      %v204 = vpack.c.b16 %v193, %v192
      %v205 = vpack.c.b16 %v195, %v194
      %v206 = vpack.c.b16 %v197, %v196
      %v207 = vpack.c.b16 %v199, %v198
      %v212 = vunpack.c.l.b16 %v161
      %v213 = vunpack.c.l.b16 %v162
      %v214 = vunpack.c.l.b16 %v163
      %v215 = vunpack.c.l.b16 %v164
      %v216 = vpack.c.b16 %v213, %v212
      %v217 = vpack.c.b16 %v215, %v214
      %vm220 = vcmask 261120
      %v222 = vsel %vm220, %v200, 0
      %v225 = vsel %vm220, %v201, 0
      %v228 = vsel %vm220, %v202, 0
      %v231 = vsel %vm220, %v203, 0
      %v234 = vsel %vm220, %v204, 0
      %v237 = vsel %vm220, %v205, 0
      %v240 = vsel %vm220, %v206, 0
      %v243 = vsel %vm220, %v207, 0
      %245 = vmatpush.bf16.msra.mxu0 0
      %246 = vmatpush.bf16.msra.mxu0 0
      %247 = vmatpush.bf16.msra.mxu0 0
      %248 = vmatpush.bf16.msra.mxu0 0
      %249 = vmatpush.bf16.msra.mxu0 0
      %250 = vmatpush.bf16.msra.mxu0 0
      %251 = vmatpush.bf16.msra.mxu0 %v217
      %252 = vmatpush.bf16.msra.mxu0 %v216
      %253 = vmatmul.bf16.gmra.mxu0 %v222
      %v254 = vpop.f32.mrf.mxu0
      %v255 = vadd.f32 %v167, %v254
      %v256 = vpop.f32.mrf.mxu0
      %v257 = vadd.f32 %v167, %v256
      %258 = vmatmul.bf16.gmra.mxu0 %v225
      %v259 = vpop.f32.mrf.mxu0
      %v260 = vadd.f32 %v167, %v259
      %v261 = vpop.f32.mrf.mxu0
      %v262 = vadd.f32 %v167, %v261
      %263 = vmatmul.bf16.gmra.mxu0 %v228
      %v264 = vpop.f32.mrf.mxu0
      %v265 = vadd.f32 %v167, %v264
      %v266 = vpop.f32.mrf.mxu0
      %v267 = vadd.f32 %v167, %v266
      %268 = vmatmul.bf16.gmra.mxu0 %v231
      %v269 = vpop.f32.mrf.mxu0
      %v270 = vadd.f32 %v167, %v269
      %v271 = vpop.f32.mrf.mxu0
      %v272 = vadd.f32 %v167, %v271
      %273 = vmatmul.bf16.gmra.mxu0 %v234
      %v274 = vpop.f32.mrf.mxu0
      %v275 = vadd.f32 %v167, %v274
      %v276 = vpop.f32.mrf.mxu0
      %v277 = vadd.f32 %v167, %v276
      %278 = vmatmul.bf16.gmra.mxu0 %v237
      %v279 = vpop.f32.mrf.mxu0
      %v280 = vadd.f32 %v167, %v279
      %v281 = vpop.f32.mrf.mxu0
      %v282 = vadd.f32 %v167, %v281
      %283 = vmatmul.bf16.gmra.mxu0 %v240
      %v284 = vpop.f32.mrf.mxu0
      %v285 = vadd.f32 %v167, %v284
      %v286 = vpop.f32.mrf.mxu0
      %v287 = vadd.f32 %v167, %v286
      %288 = vmatmul.bf16.gmra.mxu0 %v243
      %v289 = vpop.f32.mrf.mxu0
      %v290 = vadd.f32 %v167, %v289
      %v291 = vpop.f32.mrf.mxu0
      %v292 = vadd.f32 %v167, %v291
      %293 = vdwg.mxu0
      %v294 = vmax.f32 %v255, 0.0
      %v295 = vmax.f32 %v257, 0.0
      %v296 = vmax.f32 %v260, 0.0
      %v297 = vmax.f32 %v262, 0.0
      %v298 = vmax.f32 %v265, 0.0
      %v299 = vmax.f32 %v267, 0.0
      %v300 = vmax.f32 %v270, 0.0
      %v301 = vmax.f32 %v272, 0.0
      %v302 = vmax.f32 %v275, 0.0
      %v303 = vmax.f32 %v277, 0.0
      %v304 = vmax.f32 %v280, 0.0
      %v305 = vmax.f32 %v282, 0.0
      %v306 = vmax.f32 %v285, 0.0
      %v307 = vmax.f32 %v287, 0.0
      %v308 = vmax.f32 %v290, 0.0
      %v309 = vmax.f32 %v292, 0.0
      %v310 = vpack.c.bf16 %v295, %v294
      %v311 = vpack.c.bf16 %v297, %v296
      %v312 = vpack.c.bf16 %v299, %v298
      %v313 = vpack.c.bf16 %v301, %v300
      %v314 = vpack.c.bf16 %v303, %v302
      %v315 = vpack.c.bf16 %v305, %v304
      %v316 = vpack.c.bf16 %v307, %v306
      %v317 = vpack.c.bf16 %v309, %v308
      %v318 = vld [vmem:[%s1 + $0x18] sm:$0xf]
      %v319 = vld [vmem:[%s1 + $0x1c] sm:$0xf]
      %v320 = vld [vmem:[%s1 + $0x20] sm:$0xf]
      %v321 = vld [vmem:[%s1 + $0x24] sm:$0xf]
      %v322 = vld [vmem:[%s1 + $0x28] sm:$0xf]
      %v323 = vld [vmem:[%s1 + $0x2c] sm:$0xf]
      %v324 = vld [vmem:[%s1 + $0x30] sm:$0xf]
      %v325 = vld [vmem:[%s1 + $0x34] sm:$0xf]
      %v326 = vld [vmem:[%s1 + $0x38] sm:$0xf]
      %v327 = vld [vmem:[%s1 + $0x3c] sm:$0xf]
      %v328 = vld [vmem:[%s1 + $0x40] sm:$0xf]
      %v329 = vld [vmem:[%s1 + $0x44] sm:$0xf]
      %v330 = vld [vmem:[%s1 + $0x48] sm:$0xf]
      %v331 = vld [vmem:[%s1 + $0x4c] sm:$0xf]
      %v332 = vld [vmem:[%s1 + $0x50] sm:$0xf]
      %v333 = vld [vmem:[%s1 + $0x54] sm:$0xf]
      %v334 = vld [vmem:[%s1 + $0x58] sm:$0x1]
      %v335 = vunpack.c.l.bf16 %v334
      %v336 = vperm.slane %v335, 0
      %v353 = vunpack.c.l.b16 %v318
      %v354 = vunpack.c.l.b16 %v319
      %v355 = vunpack.c.l.b16 %v320
      %v356 = vunpack.c.l.b16 %v321
      %v357 = vunpack.c.l.b16 %v322
      %v358 = vunpack.c.l.b16 %v323
      %v359 = vunpack.c.l.b16 %v324
      %v360 = vunpack.c.l.b16 %v325
      %v361 = vunpack.c.l.b16 %v326
      %v362 = vunpack.c.l.b16 %v327
      %v363 = vunpack.c.l.b16 %v328
      %v364 = vunpack.c.l.b16 %v329
      %v365 = vunpack.c.l.b16 %v330
      %v366 = vunpack.c.l.b16 %v331
      %v367 = vunpack.c.l.b16 %v332
      %v368 = vunpack.c.l.b16 %v333
      %v369 = vpack.c.b16 %v354, %v353
      %v370 = vpack.c.b16 %v356, %v355
      %v371 = vpack.c.b16 %v358, %v357
      %v372 = vpack.c.b16 %v360, %v359
      %v373 = vpack.c.b16 %v362, %v361
      %v374 = vpack.c.b16 %v364, %v363
      %v375 = vpack.c.b16 %v366, %v365
      %v376 = vpack.c.b16 %v368, %v367
      %385 = vmatpush.bf16.msra.mxu0 %v376
      %386 = vmatpush.bf16.msra.mxu0 %v375
      %387 = vmatpush.bf16.msra.mxu0 %v374
      %388 = vmatpush.bf16.msra.mxu0 %v373
      %389 = vmatpush.bf16.msra.mxu0 %v372
      %390 = vmatpush.bf16.msra.mxu0 %v371
      %391 = vmatpush.bf16.msra.mxu0 %v370
      %392 = vmatpush.bf16.msra.mxu0 %v369
      %393 = vmatmul.bf16.gmra.mxu0 %v310
      %v394 = vpop.f32.mrf.mxu0
      %v395 = vadd.f32 %v336, %v394
      %v396 = vpop.f32.mrf.mxu0
      %v397 = vadd.f32 %v336, %v396
      %398 = vmatmul.bf16.gmra.mxu0 %v311
      %v399 = vpop.f32.mrf.mxu0
      %v400 = vadd.f32 %v336, %v399
      %v401 = vpop.f32.mrf.mxu0
      %v402 = vadd.f32 %v336, %v401
      %403 = vmatmul.bf16.gmra.mxu0 %v312
      %v404 = vpop.f32.mrf.mxu0
      %v405 = vadd.f32 %v336, %v404
      %v406 = vpop.f32.mrf.mxu0
      %v407 = vadd.f32 %v336, %v406
      %408 = vmatmul.bf16.gmra.mxu0 %v313
      %v409 = vpop.f32.mrf.mxu0
      %v410 = vadd.f32 %v336, %v409
      %v411 = vpop.f32.mrf.mxu0
      %v412 = vadd.f32 %v336, %v411
      %413 = vmatmul.bf16.gmra.mxu0 %v314
      %v414 = vpop.f32.mrf.mxu0
      %v415 = vadd.f32 %v336, %v414
      %v416 = vpop.f32.mrf.mxu0
      %v417 = vadd.f32 %v336, %v416
      %418 = vmatmul.bf16.gmra.mxu0 %v315
      %v419 = vpop.f32.mrf.mxu0
      %v420 = vadd.f32 %v336, %v419
      %v421 = vpop.f32.mrf.mxu0
      %v422 = vadd.f32 %v336, %v421
      %423 = vmatmul.bf16.gmra.mxu0 %v316
      %v424 = vpop.f32.mrf.mxu0
      %v425 = vadd.f32 %v336, %v424
      %v426 = vpop.f32.mrf.mxu0
      %v427 = vadd.f32 %v336, %v426
      %428 = vmatmul.bf16.gmra.mxu0 %v317
      %v429 = vpop.f32.mrf.mxu0
      %v430 = vadd.f32 %v336, %v429
      %v431 = vpop.f32.mrf.mxu0
      %v432 = vadd.f32 %v336, %v431
      %433 = vdwg.mxu0
      %v434 = vmax.f32 %v395, 0.0
      %v435 = vmax.f32 %v397, 0.0
      %v436 = vmax.f32 %v400, 0.0
      %v437 = vmax.f32 %v402, 0.0
      %v438 = vmax.f32 %v405, 0.0
      %v439 = vmax.f32 %v407, 0.0
      %v440 = vmax.f32 %v410, 0.0
      %v441 = vmax.f32 %v412, 0.0
      %v442 = vmax.f32 %v415, 0.0
      %v443 = vmax.f32 %v417, 0.0
      %v444 = vmax.f32 %v420, 0.0
      %v445 = vmax.f32 %v422, 0.0
      %v446 = vmax.f32 %v425, 0.0
      %v447 = vmax.f32 %v427, 0.0
      %v448 = vmax.f32 %v430, 0.0
      %v449 = vmax.f32 %v432, 0.0
      %v450 = vpack.c.bf16 %v435, %v434
      %v451 = vpack.c.bf16 %v437, %v436
      %v452 = vpack.c.bf16 %v439, %v438
      %v453 = vpack.c.bf16 %v441, %v440
      %v454 = vpack.c.bf16 %v443, %v442
      %v455 = vpack.c.bf16 %v445, %v444
      %v456 = vpack.c.bf16 %v447, %v446
      %v457 = vpack.c.bf16 %v449, %v448
      %v458 = vld [vmem:[%s1 + $0x60] sm:$0xf]
      %v459 = vld [vmem:[%s1 + $0x64] sm:$0xf]
      %v460 = vld [vmem:[%s1 + $0x68] sm:$0xf]
      %v461 = vld [vmem:[%s1 + $0x6c] sm:$0xf]
      %v462 = vld [vmem:[%s1 + $0x70] sm:$0xf]
      %v463 = vld [vmem:[%s1 + $0x74] sm:$0xf]
      %v464 = vld [vmem:[%s1 + $0x78] sm:$0xf]
      %v465 = vld [vmem:[%s1 + $0x7c] sm:$0xf]
      %v466 = vld [vmem:[%s1 + $0x80] sm:$0xf]
      %v467 = vld [vmem:[%s1 + $0x84] sm:$0xf]
      %v468 = vld [vmem:[%s1 + $0x88] sm:$0xf]
      %v469 = vld [vmem:[%s1 + $0x8c] sm:$0xf]
      %v470 = vld [vmem:[%s1 + $0x90] sm:$0xf]
      %v471 = vld [vmem:[%s1 + $0x94] sm:$0xf]
      %v472 = vld [vmem:[%s1 + $0x98] sm:$0xf]
      %v473 = vld [vmem:[%s1 + $0x9c] sm:$0xf]
      %v474 = vld [vmem:[%s1 + $0xa0] sm:$0x1]
      %v475 = vunpack.c.l.bf16 %v474
      %v476 = vperm.slane %v475, 0
      %v493 = vunpack.c.l.b16 %v458
      %v494 = vunpack.c.l.b16 %v459
      %v495 = vunpack.c.l.b16 %v460
      %v496 = vunpack.c.l.b16 %v461
      %v497 = vunpack.c.l.b16 %v462
      %v498 = vunpack.c.l.b16 %v463
      %v499 = vunpack.c.l.b16 %v464
      %v500 = vunpack.c.l.b16 %v465
      %v501 = vunpack.c.l.b16 %v466
      %v502 = vunpack.c.l.b16 %v467
      %v503 = vunpack.c.l.b16 %v468
      %v504 = vunpack.c.l.b16 %v469
      %v505 = vunpack.c.l.b16 %v470
      %v506 = vunpack.c.l.b16 %v471
      %v507 = vunpack.c.l.b16 %v472
      %v508 = vunpack.c.l.b16 %v473
      %v509 = vpack.c.b16 %v494, %v493
      %v510 = vpack.c.b16 %v496, %v495
      %v511 = vpack.c.b16 %v498, %v497
      %v512 = vpack.c.b16 %v500, %v499
      %v513 = vpack.c.b16 %v502, %v501
      %v514 = vpack.c.b16 %v504, %v503
      %v515 = vpack.c.b16 %v506, %v505
      %v516 = vpack.c.b16 %v508, %v507
      %525 = vmatpush.bf16.msra.mxu0 %v516
      %526 = vmatpush.bf16.msra.mxu0 %v515
      %527 = vmatpush.bf16.msra.mxu0 %v514
      %528 = vmatpush.bf16.msra.mxu0 %v513
      %529 = vmatpush.bf16.msra.mxu0 %v512
      %530 = vmatpush.bf16.msra.mxu0 %v511
      %531 = vmatpush.bf16.msra.mxu0 %v510
      %532 = vmatpush.bf16.msra.mxu0 %v509
      %533 = vmatmul.bf16.gmra.mxu0 %v450
      %v534 = vpop.f32.mrf.mxu0
      %v535 = vadd.f32 %v476, %v534
      %v536 = vpop.f32.mrf.mxu0
      %v537 = vadd.f32 %v476, %v536
      %538 = vmatmul.bf16.gmra.mxu0 %v451
      %v539 = vpop.f32.mrf.mxu0
      %v540 = vadd.f32 %v476, %v539
      %v541 = vpop.f32.mrf.mxu0
      %v542 = vadd.f32 %v476, %v541
      %543 = vmatmul.bf16.gmra.mxu0 %v452
      %v544 = vpop.f32.mrf.mxu0
      %v545 = vadd.f32 %v476, %v544
      %v546 = vpop.f32.mrf.mxu0
      %v547 = vadd.f32 %v476, %v546
      %548 = vmatmul.bf16.gmra.mxu0 %v453
      %v549 = vpop.f32.mrf.mxu0
      %v550 = vadd.f32 %v476, %v549
      %v551 = vpop.f32.mrf.mxu0
      %v552 = vadd.f32 %v476, %v551
      %553 = vmatmul.bf16.gmra.mxu0 %v454
      %v554 = vpop.f32.mrf.mxu0
      %v555 = vadd.f32 %v476, %v554
      %v556 = vpop.f32.mrf.mxu0
      %v557 = vadd.f32 %v476, %v556
      %558 = vmatmul.bf16.gmra.mxu0 %v455
      %v559 = vpop.f32.mrf.mxu0
      %v560 = vadd.f32 %v476, %v559
      %v561 = vpop.f32.mrf.mxu0
      %v562 = vadd.f32 %v476, %v561
      %563 = vmatmul.bf16.gmra.mxu0 %v456
      %v564 = vpop.f32.mrf.mxu0
      %v565 = vadd.f32 %v476, %v564
      %v566 = vpop.f32.mrf.mxu0
      %v567 = vadd.f32 %v476, %v566
      %568 = vmatmul.bf16.gmra.mxu0 %v457
      %v569 = vpop.f32.mrf.mxu0
      %v570 = vadd.f32 %v476, %v569
      %v571 = vpop.f32.mrf.mxu0
      %v572 = vadd.f32 %v476, %v571
      %573 = vdwg.mxu0
      %574 = vxpose.xlu0.b32.start [1/16] %v535, 128
      %575 = vxpose.xlu0.b32.cont [2/16] %v537, 128
      %576 = vxpose.xlu0.b32.cont [3/16] %v540, 128
      %577 = vxpose.xlu0.b32.cont [4/16] %v542, 128
      %578 = vxpose.xlu0.b32.cont [5/16] %v545, 128
      %579 = vxpose.xlu0.b32.cont [6/16] %v547, 128
      %580 = vxpose.xlu0.b32.cont [7/16] %v550, 128
      %581 = vxpose.xlu0.b32.cont [8/16] %v552, 128
      %582 = vxpose.xlu0.b32.cont [9/16] %v555, 128
      %583 = vxpose.xlu0.b32.cont [10/16] %v557, 128
      %584 = vxpose.xlu0.b32.cont [11/16] %v560, 128
      %585 = vxpose.xlu0.b32.cont [12/16] %v562, 128
      %586 = vxpose.xlu0.b32.cont [13/16] %v565, 128
      %587 = vxpose.xlu0.b32.cont [14/16] %v567, 128
      %588 = vxpose.xlu0.b32.cont [15/16] %v570, 128
      %589 = vxpose.xlu0.b32.end [16/16] %v572, 128
      %v590 = vpop.trf.xlu0
      %v591 = vpop.trf.xlu0
      %v592 = vpop.trf.xlu0
      %v593 = vpop.trf.xlu0
      %v594 = vpop.trf.xlu0
      %v595 = vpop.trf.xlu0
      %v596 = vpop.trf.xlu0
      %v597 = vpop.trf.xlu0
      %v598 = vpop.trf.xlu0
      %v599 = vpop.trf.xlu0
      %v600 = vpop.trf.xlu0
      %v601 = vpop.trf.xlu0
      %v602 = vpop.trf.xlu0
      %v603 = vpop.trf.xlu0
      %v604 = vpop.trf.xlu0
      %v605 = vpop.trf.xlu0
      %v606 = vand.u32 2147483647, %v590
      %v607 = vadd.f32 %v606, 0.01
      %608 = vst [vmem:[%s143] sm:$0x3] %v607
      %p609 = scmp.lt.s32.totalorder %s13, 1
      %s610 = scalar_select %p609, %s13, 1
      %s611 = smul.addr %s610, 2
      %s612 = scalar_lea.vmem %s2, %s611
      // Predicated region
      $region29: #{_forward_batched.1} parent=27 // pred_check
        %p613 = pneg %p78
      $region30: #{_forward_batched.1} parent=27 // pred_check_branch
        %615 = sbr.rel (%p613) target = $region32
      $region31: #{_forward_batched.1} parent=27 // pred_region
        _
      $region32: #{_forward_batched.1} parent=27 // pred_fallthru
        _
    $region28: #{_forward_batched.1} parent=5 // pred_fallthru
      _
    %p616 = scmp.le.s32.totalorder 2, %s8
    // Predicated region
    $region33: #{_forward_batched.1} parent=5 // pred_check
      %p617 = pneg %p616
    $region34: #{_forward_batched.1} parent=5 // pred_check_branch
      %619 = sbr.rel (%p617) target = $region36
    $region35: #{_forward_batched.1} parent=5 // pred_region
      %s620 = ssub.s32 %s8, 2
      // Predicated region
      $region37: #{_forward_batched.1} parent=35 // pred_check
        %p621 = pneg %p84
      $region38: #{_forward_batched.1} parent=35 // pred_check_branch
        %623 = sbr.rel (%p621) target = $region40
      $region39: #{_forward_batched.1} parent=35 // pred_region
        %p624 = scmp.lt.s32.totalorder %s14, 1
        %s625 = scalar_select %p624, %s14, 1
        %s626 = smul.addr %s625, 2
        %s627 = scalar_lea.vmem %s2, %s626
      $region40: #{_forward_batched.1} parent=35 // pred_fallthru
        _
    $region36: #{_forward_batched.1} parent=5 // pred_fallthru
      _
  $region6: #{_forward_batched.1} parent=0 // loop_footer
    %s12 = sadd.s32 1, %s8
  $region7: #{_forward_batched.1} parent=0 // loop_footer_branch
    %7 = sbr.rel target = $region3
  $region8: #{_forward_batched.1} parent=0 // loop_exit
    _

</llo_original>
